<compile_context>
chip_gen: v7x
topology: tpu7x:2x2x1
jax: 0.10.0
libtpu: 0.0.40
codegen_flags: <defaults>
</compile_context>

<pallas_src>
import functools

import jax
import jax.numpy as jnp
from jax.experimental import pallas as pl
from jax.experimental.pallas import tpu as pltpu

LANE = 128
_MIB = 1024 * 1024


def _round_up(x, m):
    return ((x + m - 1) // m) * m


def _vmem_capacity_bytes():
    """Physical per-TensorCore VMEM (generation aware, conservative fallback)."""
    try:
        return int(pltpu.get_tpu_info().vmem_capacity_bytes)
    except Exception:
        return 64 * _MIB  # v7x per-TC VMEM (smallest of v5e/v6e/v7x)


def _stack_kernel(x_ref, *refs, num_layers, relu_last, compute_dtype):
    """Forward through `num_layers` Linear(+ReLU) layers for one row tile.

    refs = (w0, b0, w1, b1, ..., w_{L-1}, b_{L-1}, out_ref).
    Weights/biases have constant index maps (VMEM-resident); intermediate
    activations never touch HBM.
    """
    o_ref = refs[-1]
    wb = refs[:-1]
    x = x_ref[...].astype(compute_dtype)       # cast in-kernel; no host pad/cast pass
    for l in range(num_layers):
        w = wb[2 * l][...]
        b = wb[2 * l + 1][...]                 # (1, N) float32
        y = jnp.dot(x, w, preferred_element_type=jnp.float32)   # MXU, f32 accumulate
        y = y + b                              # bias-add in f32
        last = l == num_layers - 1
        if (not last) or relu_last:
            y = jnp.maximum(y, 0.0)            # ReLU in f32
        if last:
            o_ref[...] = y.astype(o_ref.dtype)
        else:
            x = y.astype(compute_dtype)        # back to MXU compute dtype


def _stack_call(x2d, wbs, out_feat, out_dtype, *, relu_last, compute_dtype, tm,
                single_buffer_params, vmem_cap):
    """One fused pallas_call over a (sub-)stack of layers, grid over row tiles."""
    M, k0 = x2d.shape
    grid = (pl.cdiv(M, tm),)
    param_mode = pl.Buffered(1) if single_buffer_params else None

    in_specs = [pl.BlockSpec((tm, k0), lambda i: (i, 0))]
    flat = []
    for w, b in wbs:
        flat.append(w)
        flat.append(b)
        # Constant block index -> DMA'd once, resident across all row tiles.
        in_specs.append(pl.BlockSpec(w.shape, lambda i: (0, 0),
                                     pipeline_mode=param_mode))
        in_specs.append(pl.BlockSpec(b.shape, lambda i: (0, 0),
                                     pipeline_mode=param_mode))

    out_specs = pl.BlockSpec((tm, out_feat), lambda i: (i, 0))
    out_shape = jax.ShapeDtypeStruct((M, out_feat), out_dtype)

    param_bytes = sum(a.size * a.dtype.itemsize for a in flat)
    bufs = 1 if single_buffer_params else 2
    max_feat = max([k0, out_feat] + [w.shape[1] for w, _ in wbs])
    act_bytes = (2 * tm * k0 * x2d.dtype.itemsize                 # x tiles (double buffered)
                 + 2 * tm * out_feat * jnp.dtype(out_dtype).itemsize   # out tiles
                 + 3 * tm * max_feat * 4)                          # live f32 intermediates
    required = bufs * param_bytes + act_bytes
    vmem_limit = int(min(max(required * 5 // 4 + 2 * _MIB, 16 * _MIB),
                         vmem_cap * 9 // 10))

    # Honest advisory cost estimate (unpadded x / out byte accounting).
    flops = sum(2 * M * w.shape[0] * w.shape[1] for w, _ in wbs)
    bytes_accessed = (x2d.size * x2d.dtype.itemsize
                      + param_bytes
                      + M * out_feat * jnp.dtype(out_dtype).itemsize)

    return pl.pallas_call(
        functools.partial(_stack_kernel, num_layers=len(wbs),
                          relu_last=relu_last, compute_dtype=compute_dtype),
        out_shape=out_shape,
        grid=grid,
        in_specs=in_specs,
        out_specs=out_specs,
        compiler_params=pltpu.CompilerParams(
            dimension_semantics=("parallel",),
            vmem_limit_bytes=vmem_limit,
        ),
        cost_estimate=pl.CostEstimate(
            flops=int(flops),
            transcendentals=0,
            bytes_accessed=int(bytes_accessed),
        ),
    )(x2d, *flat)


def mlp_forward(x, params, *, compute_dtype=jnp.bfloat16, tm_max=512):
    """x: (..., input_dim); params: list of (w_t (n_in, n_out), b (n_out,)) in f32."""
    num_layers = len(params)
    lead_shape = x.shape[:-1]
    in_dim = x.shape[-1]
    out_dim = params[-1][0].shape[-1]

    x2d = x.reshape(-1, in_dim)
    M = x2d.shape[0]
    vmem_cap = _vmem_capacity_bytes()

    # Feature dims: keep the TRUE input dim (x read unpadded) and TRUE output
    # dim (masked store); pad hidden dims to lane multiples for dense MXU passes.
    dims = [in_dim] + [w.shape[1] for w, _ in params]
    dims_p = [in_dim] + [_round_up(d, LANE) for d in dims[1:-1]] + [out_dim]
    max_feat = max(dims_p)

    # Row tile: as large as the per-step overhead argues for, but (a) give the
    # grid >= 2 steps so both v7x TensorCores get work, and (b) keep the
    # activation working set well under VMEM.
    tm = min(tm_max, _round_up(M, 8))
    if M >= 16 and pl.cdiv(M, tm) < 2:
        tm = _round_up(pl.cdiv(M, 2), 8)
    while tm > 8 and 7 * tm * max_feat * 4 > vmem_cap // 4:
        tm = max(8, _round_up(tm // 2, 8))

    # Zero-pad / transpose-free parameter prep (weights already stored (n_in, n_out)).
    wbs = []
    for l, (w_t, b) in enumerate(params):
        d_in, d_out = w_t.shape
        w_p = jnp.pad(w_t, ((0, dims_p[l] - d_in), (0, dims_p[l + 1] - d_out)))
        b_p = jnp.pad(b, (0, dims_p[l + 1] - d_out)).reshape(1, -1)
        wbs.append((w_p.astype(compute_dtype), b_p.astype(jnp.float32)))

    # Greedy layer chunking: keep the whole stack fused when the resident
    # (single-buffered) parameters fit the per-TC VMEM budget; otherwise split
    # into sequential fused chunks (weight streaming fallback for huge MLPs).
    act_budget = 7 * tm * max_feat * 4
    param_budget = max(vmem_cap * 8 // 10 - act_budget, vmem_cap // 4)

    def layer_bytes(l):
        w, b = wbs[l]
        return w.size * w.dtype.itemsize + b.size * b.dtype.itemsize

    chunks, cur, cur_bytes = [], [], 0
    for l in range(num_layers):
        lb = layer_bytes(l)
        if cur and cur_bytes + lb > param_budget:
            chunks.append(cur)
            cur, cur_bytes = [], 0
        cur.append(l)
        cur_bytes += lb
    chunks.append(cur)
    # TODO(synk): for the multi-chunk (streaming) path on v7x, fp8 weight
    # storage with per-tensor scales would halve streamed weight bytes.

    def run(single_buffer):
        h = x2d
        for ci, chunk in enumerate(chunks):
            last_chunk = ci == len(chunks) - 1
            chunk_wbs = [wbs[l] for l in chunk]
            out_feat = dims_p[chunk[-1] + 1]
            out_dtype = jnp.float32 if last_chunk else compute_dtype
            h = _stack_call(h, chunk_wbs, out_feat, out_dtype,
                            relu_last=not last_chunk,
                            compute_dtype=compute_dtype, tm=tm,
                            single_buffer_params=single_buffer,
                            vmem_cap=vmem_cap)
        return h

    try:
        out = jax.block_until_ready(run(True))
    except Exception:
        # pl.Buffered(1) not accepted on this build -> default double buffering.
        out = run(False)

    return out.reshape(*lead_shape, out_dim)


def init_mlp_params(key, input_dim, hidden_dim, output_dim, num_layers,
                    dtype=jnp.float32):
    """Deterministic init matching nn.Linear default (U(-1/sqrt(fan_in), +))."""
    h = [hidden_dim] * (num_layers - 1)
    dims = list(zip([input_dim] + h, h + [output_dim]))  # (n_in, n_out) per layer
    params = []
    for (n_in, n_out) in dims:
        key, kw, kb = jax.random.split(key, 3)
        bound = 1.0 / (n_in ** 0.5)
        # stored transposed: (n_in, n_out) so the kernel does y = x @ W_t + b
        w_t = jax.random.uniform(kw, (n_in, n_out), dtype, -bound, bound)
        b = jax.random.uniform(kb, (n_out,), dtype, -bound, bound)
        params.append((w_t, b))
    return params


def mlp_reference(x, params):
    """Pure-JAX f32 reference for correctness checking."""
    num_layers = len(params)
    for i, (w_t, b) in enumerate(params):
        x = x @ w_t + b
        if i < num_layers - 1:
            x = jnp.maximum(x, 0.0)
    return x


if __name__ == "__main__":
    # Small shapes consistent with the module's forward.
    batch, seq = 2, 8
    input_dim, hidden_dim, output_dim, num_layers = 32, 64, 16, 3

    key = jax.random.PRNGKey(0)
    key, kx = jax.random.split(key)
    x = jax.random.normal(kx, (batch, seq, input_dim), jnp.float32)

    params = init_mlp_params(key, input_dim, hidden_dim, output_dim, num_layers)
    ref = mlp_reference(x, params)

    # Optimized bf16 path (f32 accumulation) -> loose tolerance vs f32 reference.
    out_bf16 = jax.block_until_ready(mlp_forward(x, params,
                                                 compute_dtype=jnp.bfloat16))
    assert out_bf16.shape == (batch, seq, output_dim), out_bf16.shape
    assert jnp.allclose(out_bf16, ref, atol=2e-2, rtol=2e-2), \
        "bf16 kernel mismatch vs reference"

    # Full-precision path of the same fused kernel -> tight tolerance.
    out_f32 = jax.block_until_ready(mlp_forward(x, params,
                                                compute_dtype=jnp.float32))
    assert out_f32.shape == (batch, seq, output_dim), out_f32.shape
    assert jnp.allclose(out_f32, ref, atol=1e-5, rtol=1e-5), \
        "f32 kernel mismatch vs reference"

    print("KERNEL_OK")
</pallas_src>

<mosaic_0001>
module attributes {stable_mosaic.version = 11 : i64} {
  func.func @_stack_kernel(%arg0: i32, %arg1: memref<8x32xf32, #tpu.memory_space<vmem>>, %arg2: memref<32x128xbf16, #tpu.memory_space<vmem>>, %arg3: memref<1x128xf32, #tpu.memory_space<vmem>>, %arg4: memref<128x128xbf16, #tpu.memory_space<vmem>>, %arg5: memref<1x128xf32, #tpu.memory_space<vmem>>, %arg6: memref<128x16xbf16, #tpu.memory_space<vmem>>, %arg7: memref<1x16xf32, #tpu.memory_space<vmem>>, %arg8: memref<8x16xf32, #tpu.memory_space<vmem>>) attributes {dimension_semantics = [#tpu.dimension_semantics<parallel>], iteration_bounds = array<i64: 2>, scalar_prefetch = 0 : i64, scratch_operands = 0 : i64, tpu.core_type = #tpu.core_type<tc>, window_params = [{transform_indices = @transform_0, window_bounds = array<i64: 8, 32>}, {pipeline_mode = #tpu.pipeline_mode<synchronous>, transform_indices = @transform_1, window_bounds = array<i64: 32, 128>}, {pipeline_mode = #tpu.pipeline_mode<synchronous>, transform_indices = @transform_2, window_bounds = array<i64: 1, 128>}, {pipeline_mode = #tpu.pipeline_mode<synchronous>, transform_indices = @transform_3, window_bounds = array<i64: 128, 128>}, {pipeline_mode = #tpu.pipeline_mode<synchronous>, transform_indices = @transform_4, window_bounds = array<i64: 1, 128>}, {pipeline_mode = #tpu.pipeline_mode<synchronous>, transform_indices = @transform_5, window_bounds = array<i64: 128, 16>}, {pipeline_mode = #tpu.pipeline_mode<synchronous>, transform_indices = @transform_6, window_bounds = array<i64: 1, 16>}, {transform_indices = @transform_7, window_bounds = array<i64: 8, 16>}]} {
    %c0 = arith.constant 0 : index
    %c0_0 = arith.constant 0 : index
    %0 = vector.load %arg1[%c0, %c0_0] : memref<8x32xf32, #tpu.memory_space<vmem>>, vector<8x32xf32>
    %1 = arith.truncf %0 : vector<8x32xf32> to vector<8x32xbf16>
    %c0_1 = arith.constant 0 : index
    %c0_2 = arith.constant 0 : index
    %2 = vector.load %arg2[%c0_1, %c0_2] : memref<32x128xbf16, #tpu.memory_space<vmem>>, vector<32x128xbf16>
    %c0_3 = arith.constant 0 : index
    %c0_4 = arith.constant 0 : index
    %3 = vector.load %arg3[%c0_3, %c0_4] : memref<1x128xf32, #tpu.memory_space<vmem>>, vector<1x128xf32>
    %cst = arith.constant dense<0.000000e+00> : vector<8x128xf32>
    %4 = tpu.matmul %1, %2, %cst {dimension_numbers = #tpu.dot_dimension_numbers<[1], [0], [0], [1], [0, 0, 1, 1], [], []>} : vector<8x32xbf16>, vector<32x128xbf16>, vector<8x128xf32> -> vector<8x128xf32>
    %5 = vector.broadcast %3 : vector<1x128xf32> to vector<8x128xf32>
    %6 = arith.addf %4, %5 : vector<8x128xf32>
    %cst_5 = arith.constant 0.000000e+00 : f32
    %7 = vector.broadcast %cst_5 : f32 to vector<8x128xf32>
    %8 = arith.maximumf %6, %7 : vector<8x128xf32>
    %9 = arith.truncf %8 : vector<8x128xf32> to vector<8x128xbf16>
    %c0_6 = arith.constant 0 : index
    %c0_7 = arith.constant 0 : index
    %10 = vector.load %arg4[%c0_6, %c0_7] : memref<128x128xbf16, #tpu.memory_space<vmem>>, vector<128x128xbf16>
    %c0_8 = arith.constant 0 : index
    %c0_9 = arith.constant 0 : index
    %11 = vector.load %arg5[%c0_8, %c0_9] : memref<1x128xf32, #tpu.memory_space<vmem>>, vector<1x128xf32>
    %cst_10 = arith.constant dense<0.000000e+00> : vector<8x128xf32>
    %12 = tpu.matmul %9, %10, %cst_10 {dimension_numbers = #tpu.dot_dimension_numbers<[1], [0], [0], [1], [0, 0, 1, 1], [], []>} : vector<8x128xbf16>, vector<128x128xbf16>, vector<8x128xf32> -> vector<8x128xf32>
    %13 = vector.broadcast %11 : vector<1x128xf32> to vector<8x128xf32>
    %14 = arith.addf %12, %13 : vector<8x128xf32>
    %cst_11 = arith.constant 0.000000e+00 : f32
    %15 = vector.broadcast %cst_11 : f32 to vector<8x128xf32>
    %16 = arith.maximumf %14, %15 : vector<8x128xf32>
    %17 = arith.truncf %16 : vector<8x128xf32> to vector<8x128xbf16>
    %c0_12 = arith.constant 0 : index
    %c0_13 = arith.constant 0 : index
    %18 = vector.load %arg6[%c0_12, %c0_13] : memref<128x16xbf16, #tpu.memory_space<vmem>>, vector<128x16xbf16>
    %c0_14 = arith.constant 0 : index
    %c0_15 = arith.constant 0 : index
    %19 = vector.load %arg7[%c0_14, %c0_15] : memref<1x16xf32, #tpu.memory_space<vmem>>, vector<1x16xf32>
    %cst_16 = arith.constant dense<0.000000e+00> : vector<8x16xf32>
    %20 = tpu.matmul %17, %18, %cst_16 {dimension_numbers = #tpu.dot_dimension_numbers<[1], [0], [0], [1], [0, 0, 1, 1], [], []>} : vector<8x128xbf16>, vector<128x16xbf16>, vector<8x16xf32> -> vector<8x16xf32>
    %21 = vector.broadcast %19 : vector<1x16xf32> to vector<8x16xf32>
    %22 = arith.addf %20, %21 : vector<8x16xf32>
    %c0_17 = arith.constant 0 : index
    %c0_18 = arith.constant 0 : index
    %23 = vector.load %arg8[%c0_17, %c0_18] : memref<8x16xf32, #tpu.memory_space<vmem>>, vector<8x16xf32>
    tpu.vector_store %arg8[%c0_17, %c0_18], %22 {strides = array<i32>} : memref<8x16xf32, #tpu.memory_space<vmem>>, vector<8x16xf32>,
    return
  }
  func.func @transform_0(%arg0: i32) -> (i32, i32) {
    %c0_i32 = arith.constant 0 : i32
    %c0_i32_0 = arith.constant 0 : i32
    return %arg0, %c0_i32 : i32, i32
  }
  func.func @transform_1(%arg0: i32) -> (i32, i32) {
    %c0_i32 = arith.constant 0 : i32
    %c0_i32_0 = arith.constant 0 : i32
    %c0_i32_1 = arith.constant 0 : i32
    return %c0_i32, %c0_i32_0 : i32, i32
  }
  func.func @transform_2(%arg0: i32) -> (i32, i32) {
    %c0_i32 = arith.constant 0 : i32
    %c0_i32_0 = arith.constant 0 : i32
    %c0_i32_1 = arith.constant 0 : i32
    return %c0_i32, %c0_i32_0 : i32, i32
  }
  func.func @transform_3(%arg0: i32) -> (i32, i32) {
    %c0_i32 = arith.constant 0 : i32
    %c0_i32_0 = arith.constant 0 : i32
    %c0_i32_1 = arith.constant 0 : i32
    return %c0_i32, %c0_i32_0 : i32, i32
  }
  func.func @transform_4(%arg0: i32) -> (i32, i32) {
    %c0_i32 = arith.constant 0 : i32
    %c0_i32_0 = arith.constant 0 : i32
    %c0_i32_1 = arith.constant 0 : i32
    return %c0_i32, %c0_i32_0 : i32, i32
  }
  func.func @transform_5(%arg0: i32) -> (i32, i32) {
    %c0_i32 = arith.constant 0 : i32
    %c0_i32_0 = arith.constant 0 : i32
    %c0_i32_1 = arith.constant 0 : i32
    return %c0_i32, %c0_i32_0 : i32, i32
  }
  func.func @transform_6(%arg0: i32) -> (i32, i32) {
    %c0_i32 = arith.constant 0 : i32
    %c0_i32_0 = arith.constant 0 : i32
    %c0_i32_1 = arith.constant 0 : i32
    return %c0_i32, %c0_i32_0 : i32, i32
  }
  func.func @transform_7(%arg0: i32) -> (i32, i32) {
    %c0_i32 = arith.constant 0 : i32
    %c0_i32_0 = arith.constant 0 : i32
    return %arg0, %c0_i32 : i32, i32
  }
}

module attributes {stable_mosaic.version = 11 : i64} {
  func.func @_stack_kernel(%arg0: i32, %arg1: memref<8x32xf32, #tpu.memory_space<vmem>>, %arg2: memref<32x128xbf16, #tpu.memory_space<vmem>>, %arg3: memref<1x128xf32, #tpu.memory_space<vmem>>, %arg4: memref<128x128xbf16, #tpu.memory_space<vmem>>, %arg5: memref<1x128xf32, #tpu.memory_space<vmem>>, %arg6: memref<128x16xbf16, #tpu.memory_space<vmem>>, %arg7: memref<1x16xf32, #tpu.memory_space<vmem>>, %arg8: memref<8x16xf32, #tpu.memory_space<vmem>>) attributes {dimension_semantics = [#tpu.dimension_semantics<parallel>], iteration_bounds = array<i64: 2>, scalar_prefetch = 0 : i64, scratch_operands = 0 : i64, tpu.core_type = #tpu.core_type<tc>, window_params = [{transform_indices = @transform_0, window_bounds = array<i64: 8, 32>}, {pipeline_mode = #tpu.pipeline_mode<synchronous>, transform_indices = @transform_1, window_bounds = array<i64: 32, 128>}, {pipeline_mode = #tpu.pipeline_mode<synchronous>, transform_indices = @transform_2, window_bounds = array<i64: 1, 128>}, {pipeline_mode = #tpu.pipeline_mode<synchronous>, transform_indices = @transform_3, window_bounds = array<i64: 128, 128>}, {pipeline_mode = #tpu.pipeline_mode<synchronous>, transform_indices = @transform_4, window_bounds = array<i64: 1, 128>}, {pipeline_mode = #tpu.pipeline_mode<synchronous>, transform_indices = @transform_5, window_bounds = array<i64: 128, 16>}, {pipeline_mode = #tpu.pipeline_mode<synchronous>, transform_indices = @transform_6, window_bounds = array<i64: 1, 16>}, {transform_indices = @transform_7, window_bounds = array<i64: 8, 16>}]} {
    %c0 = arith.constant 0 : index
    %c0_0 = arith.constant 0 : index
    %0 = vector.load %arg1[%c0, %c0_0] : memref<8x32xf32, #tpu.memory_space<vmem>>, vector<8x32xf32>
    %1 = arith.truncf %0 : vector<8x32xf32> to vector<8x32xbf16>
    %c0_1 = arith.constant 0 : index
    %c0_2 = arith.constant 0 : index
    %2 = vector.load %arg2[%c0_1, %c0_2] : memref<32x128xbf16, #tpu.memory_space<vmem>>, vector<32x128xbf16>
    %c0_3 = arith.constant 0 : index
    %c0_4 = arith.constant 0 : index
    %3 = vector.load %arg3[%c0_3, %c0_4] : memref<1x128xf32, #tpu.memory_space<vmem>>, vector<1x128xf32>
    %cst = arith.constant dense<0.000000e+00> : vector<8x128xf32>
    %4 = tpu.matmul %1, %2, %cst {dimension_numbers = #tpu.dot_dimension_numbers<[1], [0], [0], [1], [0, 0, 1, 1], [], []>} : vector<8x32xbf16>, vector<32x128xbf16>, vector<8x128xf32> -> vector<8x128xf32>
    %5 = vector.broadcast %3 : vector<1x128xf32> to vector<8x128xf32>
    %6 = arith.addf %4, %5 : vector<8x128xf32>
    %cst_5 = arith.constant 0.000000e+00 : f32
    %7 = vector.broadcast %cst_5 : f32 to vector<8x128xf32>
    %8 = arith.maximumf %6, %7 : vector<8x128xf32>
    %9 = arith.truncf %8 : vector<8x128xf32> to vector<8x128xbf16>
    %c0_6 = arith.constant 0 : index
    %c0_7 = arith.constant 0 : index
    %10 = vector.load %arg4[%c0_6, %c0_7] : memref<128x128xbf16, #tpu.memory_space<vmem>>, vector<128x128xbf16>
    %c0_8 = arith.constant 0 : index
    %c0_9 = arith.constant 0 : index
    %11 = vector.load %arg5[%c0_8, %c0_9] : memref<1x128xf32, #tpu.memory_space<vmem>>, vector<1x128xf32>
    %cst_10 = arith.constant dense<0.000000e+00> : vector<8x128xf32>
    %12 = tpu.matmul %9, %10, %cst_10 {dimension_numbers = #tpu.dot_dimension_numbers<[1], [0], [0], [1], [0, 0, 1, 1], [], []>} : vector<8x128xbf16>, vector<128x128xbf16>, vector<8x128xf32> -> vector<8x128xf32>
    %13 = vector.broadcast %11 : vector<1x128xf32> to vector<8x128xf32>
    %14 = arith.addf %12, %13 : vector<8x128xf32>
    %cst_11 = arith.constant 0.000000e+00 : f32
    %15 = vector.broadcast %cst_11 : f32 to vector<8x128xf32>
    %16 = arith.maximumf %14, %15 : vector<8x128xf32>
    %17 = arith.truncf %16 : vector<8x128xf32> to vector<8x128xbf16>
    %c0_12 = arith.constant 0 : index
    %c0_13 = arith.constant 0 : index
    %18 = vector.load %arg6[%c0_12, %c0_13] : memref<128x16xbf16, #tpu.memory_space<vmem>>, vector<128x16xbf16>
    %c0_14 = arith.constant 0 : index
    %c0_15 = arith.constant 0 : index
    %19 = vector.load %arg7[%c0_14, %c0_15] : memref<1x16xf32, #tpu.memory_space<vmem>>, vector<1x16xf32>
    %cst_16 = arith.constant dense<0.000000e+00> : vector<8x16xf32>
    %20 = tpu.matmul %17, %18, %cst_16 {dimension_numbers = #tpu.dot_dimension_numbers<[1], [0], [0], [1], [0, 0, 1, 1], [], []>} : vector<8x128xbf16>, vector<128x16xbf16>, vector<8x16xf32> -> vector<8x16xf32>
    %21 = vector.broadcast %19 : vector<1x16xf32> to vector<8x16xf32>
    %22 = arith.addf %20, %21 : vector<8x16xf32>
    %c0_17 = arith.constant 0 : index
    %c0_18 = arith.constant 0 : index
    %23 = vector.load %arg8[%c0_17, %c0_18] : memref<8x16xf32, #tpu.memory_space<vmem>>, vector<8x16xf32>
    tpu.vector_store %arg8[%c0_17, %c0_18], %22 {strides = array<i32>} : memref<8x16xf32, #tpu.memory_space<vmem>>, vector<8x16xf32>,
    return
  }
  func.func @transform_0(%arg0: i32) -> (i32, i32) {
    %c0_i32 = arith.constant 0 : i32
    %c0_i32_0 = arith.constant 0 : i32
    return %arg0, %c0_i32 : i32, i32
  }
  func.func @transform_1(%arg0: i32) -> (i32, i32) {
    %c0_i32 = arith.constant 0 : i32
    %c0_i32_0 = arith.constant 0 : i32
    %c0_i32_1 = arith.constant 0 : i32
    return %c0_i32, %c0_i32_0 : i32, i32
  }
  func.func @transform_2(%arg0: i32) -> (i32, i32) {
    %c0_i32 = arith.constant 0 : i32
    %c0_i32_0 = arith.constant 0 : i32
    %c0_i32_1 = arith.constant 0 : i32
    return %c0_i32, %c0_i32_0 : i32, i32
  }
  func.func @transform_3(%arg0: i32) -> (i32, i32) {
    %c0_i32 = arith.constant 0 : i32
    %c0_i32_0 = arith.constant 0 : i32
    %c0_i32_1 = arith.constant 0 : i32
    return %c0_i32, %c0_i32_0 : i32, i32
  }
  func.func @transform_4(%arg0: i32) -> (i32, i32) {
    %c0_i32 = arith.constant 0 : i32
    %c0_i32_0 = arith.constant 0 : i32
    %c0_i32_1 = arith.constant 0 : i32
    return %c0_i32, %c0_i32_0 : i32, i32
  }
  func.func @transform_5(%arg0: i32) -> (i32, i32) {
    %c0_i32 = arith.constant 0 : i32
    %c0_i32_0 = arith.constant 0 : i32
    %c0_i32_1 = arith.constant 0 : i32
    return %c0_i32, %c0_i32_0 : i32, i32
  }
  func.func @transform_6(%arg0: i32) -> (i32, i32) {
    %c0_i32 = arith.constant 0 : i32
    %c0_i32_0 = arith.constant 0 : i32
    %c0_i32_1 = arith.constant 0 : i32
    return %c0_i32, %c0_i32_0 : i32, i32
  }
  func.func @transform_7(%arg0: i32) -> (i32, i32) {
    %c0_i32 = arith.constant 0 : i32
    %c0_i32_0 = arith.constant 0 : i32
    return %arg0, %c0_i32 : i32, i32
  }
}

</mosaic_0001>

<llo_original>
// kernel: tpu_custom_call.1
$region0: #{tpu_custom_call.1}
  #allocation0 [shape = 'u32[]', space=smem, size = 0x4, offset = 0x4, fixed_abs, tag = 'smem constant byte address 0x4 - core index']
  #allocation1 [shape = 'u32[144,128]{1,0:T(1,128)}', space=vmem, size = 0x12000, scoped, tag = 'internal scratch']
  %s0 = inlined_call_operand.vmem [shape: f32[16,32], index: 0, kind: input, shape index: {}]
  %s1 = inlined_call_operand.hbm [shape: bf16[32,128], index: 1, kind: input, shape index: {}]
  %s2 = inlined_call_operand.vmem [shape: f32[1,128], index: 2, kind: input, shape index: {}]
  %s3 = inlined_call_operand.vmem [shape: bf16[128,128], index: 3, kind: input, shape index: {}]
  %s4 = inlined_call_operand.vmem [shape: f32[1,128], index: 4, kind: input, shape index: {}]
  %s5 = inlined_call_operand.vmem [shape: bf16[128,16], index: 5, kind: input, shape index: {}]
  %s6 = inlined_call_operand.vmem [shape: f32[1,16], index: 6, kind: input, shape index: {}]
  %s7 = inlined_call_operand.hbm [shape: f32[16,16], index: 7, kind: output, shape index: {}]
  %s8 = sld [smem:[#allocation0]]
  $region65: #{tpu_custom_call.1} parent=0
    _
  %s10 = ssub.s32 1, %s8
  %s11 = scalar_select 0, %s10, %s8
  $region1: #{tpu_custom_call.1} parent=0
    #allocation2 [shape = 'u8[8192]{0}', space=vmem, size = 0x2000, scoped, tag = 'input window, operand 1, single buffered']
    #allocation3 [shape = 's32[2]{0}', space=sflag, size = 0x8, scoped, tag = 'scoped memory for tpu_custom_call.1']
    #allocation4 [shape = 's32[2]{0}', space=sflag, size = 0x8, scoped, tag = 'scoped memory for tpu_custom_call.1']
    #allocation5 [shape = 'u8[8192]{0}', space=vmem, size = 0x2000, scoped, tag = 'output window, operand 0']
    %12 = vsyncpa [#allocation3], 0
    %13 = vsyncpa [#allocation4], 0
    %s14 = scalar_lea.sflag [#allocation4], 1
    %15 = vsyncpa %s14, 0
    loop: start=0, step=1, limit=4
    $region2: #{tpu_custom_call.1} parent=1 // loop_pre_header
      _
    $region3: #{tpu_custom_call.1} parent=1 // loop_header
      %s17 = sphi 0, %s21
      %p18 = scmp.ge.s32.totalorder %s17, 4
      %s27 = sphi 0, %s29
      %s30 = sphi 0, %s27
      %s31 = sphi 0, %s30
      %s47 = sphi 0, %s31
      %s51 = sphi 0, %s51
      %s53 = sphi 0, %s51
      %s54 = sphi 0, %s53
      %s68 = sphi 0, %s54
      %s72 = sphi 0, %s72
      %s74 = sphi 0, %s72
      %s75 = sphi 0, %s74
      %s89 = sphi 0, %s75
      %s93 = sphi 0, %s93
      %s95 = sphi 0, %s93
      %s96 = sphi 0, %s95
      %s110 = sphi 0, %s96
      %s114 = sphi 0, %s114
      %s116 = sphi 0, %s114
      %s117 = sphi 0, %s116
      %s131 = sphi 0, %s117
      %s135 = sphi 0, %s135
      %s137 = sphi 0, %s135
      %s138 = sphi 0, %s137
      %s152 = sphi 0, %s138
      %s156 = sphi 0, %s156
      %s158 = sphi 0, %s156
      %s159 = sphi 0, %s158
      %s173 = sphi 0, %s159
      %s179 = sphi 0, %s181
      %s182 = sphi 0, %s179
      %s183 = sphi 0, %s182
      %s199 = sphi 0, %s183
    $region4: #{tpu_custom_call.1} parent=1 // loop_header_branch
      %20 = sbr.rel (%p18) target = $region8
    $region5: #{tpu_custom_call.1} parent=1 // loop_body
      %s22 = ssub.s32 %s17, 1
      %s23 = ssub.s32 %s17, 2
      %s24 = sadd.s32 %s17, 1
      %s25 = ssub.s32 %s17, %s24
      %p26 = scmp.eq.s32.totalorder %s25, 0
      %s28 = sadd.s32 %s27, 1
      %s29 = scalar_select %p26, %s27, %s28
      %p32 = pneg %p26
      %p33 = scmp.eq.s32.totalorder %s17, 1
      %p34 = por %p32, %p33
      %p35 = scmp.ne.s32.totalorder %s27, %s30
      %p36 = scmp.eq.s32.totalorder %s17, 0
      %p37 = por %p35, %p36
      %p38 = scmp.ne.s32.totalorder %s27, %s30
      %p39 = scmp.eq.s32.totalorder %s22, 1
      %p40 = por %p38, %p39
      %p41 = scmp.ne.s32.totalorder %s30, %s31
      %p42 = scmp.eq.s32.totalorder %s22, 0
      %p43 = por %p41, %p42
      %p44 = scmp.ne.s32.totalorder %s30, %s31
      %p45 = scmp.eq.s32.totalorder %s23, 1
      %p46 = por %p44, %p45
      %p48 = scmp.ne.s32.totalorder %s31, %s47
      %p49 = scmp.eq.s32.totalorder %s23, 0
      %p50 = por %p48, %p49
      %s52 = sadd.s32 %s51, 1
      %p55 = scmp.eq.s32.totalorder %s17, 1
      %p56 = scmp.ne.s32.totalorder %s51, %s53
      %p57 = scmp.eq.s32.totalorder %s17, 0
      %p58 = por %p56, %p57
      %p59 = scmp.ne.s32.totalorder %s51, %s53
      %p60 = scmp.eq.s32.totalorder %s22, 1
      %p61 = por %p59, %p60
      %p62 = scmp.ne.s32.totalorder %s53, %s54
      %p63 = scmp.eq.s32.totalorder %s22, 0
      %p64 = por %p62, %p63
      %p65 = scmp.ne.s32.totalorder %s53, %s54
      %p66 = scmp.eq.s32.totalorder %s23, 1
      %p67 = por %p65, %p66
      %p69 = scmp.ne.s32.totalorder %s54, %s68
      %p70 = scmp.eq.s32.totalorder %s23, 0
      %p71 = por %p69, %p70
      %s73 = sadd.s32 %s72, 1
      %p76 = scmp.eq.s32.totalorder %s17, 1
      %p77 = scmp.ne.s32.totalorder %s72, %s74
      %p78 = scmp.eq.s32.totalorder %s17, 0
      %p79 = por %p77, %p78
      %p80 = scmp.ne.s32.totalorder %s72, %s74
      %p81 = scmp.eq.s32.totalorder %s22, 1
      %p82 = por %p80, %p81
      %p83 = scmp.ne.s32.totalorder %s74, %s75
      %p84 = scmp.eq.s32.totalorder %s22, 0
      %p85 = por %p83, %p84
      %p86 = scmp.ne.s32.totalorder %s74, %s75
      %p87 = scmp.eq.s32.totalorder %s23, 1
      %p88 = por %p86, %p87
      %p90 = scmp.ne.s32.totalorder %s75, %s89
      %p91 = scmp.eq.s32.totalorder %s23, 0
      %p92 = por %p90, %p91
      %s94 = sadd.s32 %s93, 1
      %p97 = scmp.eq.s32.totalorder %s17, 1
      %p98 = scmp.ne.s32.totalorder %s93, %s95
      %p99 = scmp.eq.s32.totalorder %s17, 0
      %p100 = por %p98, %p99
      %p101 = scmp.ne.s32.totalorder %s93, %s95
      %p102 = scmp.eq.s32.totalorder %s22, 1
      %p103 = por %p101, %p102
      %p104 = scmp.ne.s32.totalorder %s95, %s96
      %p105 = scmp.eq.s32.totalorder %s22, 0
      %p106 = por %p104, %p105
      %p107 = scmp.ne.s32.totalorder %s95, %s96
      %p108 = scmp.eq.s32.totalorder %s23, 1
      %p109 = por %p107, %p108
      %p111 = scmp.ne.s32.totalorder %s96, %s110
      %p112 = scmp.eq.s32.totalorder %s23, 0
      %p113 = por %p111, %p112
      %s115 = sadd.s32 %s114, 1
      %p118 = scmp.eq.s32.totalorder %s17, 1
      %p119 = scmp.ne.s32.totalorder %s114, %s116
      %p120 = scmp.eq.s32.totalorder %s17, 0
      %p121 = por %p119, %p120
      %p122 = scmp.ne.s32.totalorder %s114, %s116
      %p123 = scmp.eq.s32.totalorder %s22, 1
      %p124 = por %p122, %p123
      %p125 = scmp.ne.s32.totalorder %s116, %s117
      %p126 = scmp.eq.s32.totalorder %s22, 0
      %p127 = por %p125, %p126
      %p128 = scmp.ne.s32.totalorder %s116, %s117
      %p129 = scmp.eq.s32.totalorder %s23, 1
      %p130 = por %p128, %p129
      %p132 = scmp.ne.s32.totalorder %s117, %s131
      %p133 = scmp.eq.s32.totalorder %s23, 0
      %p134 = por %p132, %p133
      %s136 = sadd.s32 %s135, 1
      %p139 = scmp.eq.s32.totalorder %s17, 1
      %p140 = scmp.ne.s32.totalorder %s135, %s137
      %p141 = scmp.eq.s32.totalorder %s17, 0
      %p142 = por %p140, %p141
      %p143 = scmp.ne.s32.totalorder %s135, %s137
      %p144 = scmp.eq.s32.totalorder %s22, 1
      %p145 = por %p143, %p144
      %p146 = scmp.ne.s32.totalorder %s137, %s138
      %p147 = scmp.eq.s32.totalorder %s22, 0
      %p148 = por %p146, %p147
      %p149 = scmp.ne.s32.totalorder %s137, %s138
      %p150 = scmp.eq.s32.totalorder %s23, 1
      %p151 = por %p149, %p150
      %p153 = scmp.ne.s32.totalorder %s138, %s152
      %p154 = scmp.eq.s32.totalorder %s23, 0
      %p155 = por %p153, %p154
      %s157 = sadd.s32 %s156, 1
      %p160 = scmp.eq.s32.totalorder %s17, 1
      %p161 = scmp.ne.s32.totalorder %s156, %s158
      %p162 = scmp.eq.s32.totalorder %s17, 0
      %p163 = por %p161, %p162
      %p164 = scmp.ne.s32.totalorder %s156, %s158
      %p165 = scmp.eq.s32.totalorder %s22, 1
      %p166 = por %p164, %p165
      %p167 = scmp.ne.s32.totalorder %s158, %s159
      %p168 = scmp.eq.s32.totalorder %s22, 0
      %p169 = por %p167, %p168
      %p170 = scmp.ne.s32.totalorder %s158, %s159
      %p171 = scmp.eq.s32.totalorder %s23, 1
      %p172 = por %p170, %p171
      %p174 = scmp.ne.s32.totalorder %s159, %s173
      %p175 = scmp.eq.s32.totalorder %s23, 0
      %p176 = por %p174, %p175
      %s177 = ssub.s32 %s17, %s24
      %p178 = scmp.eq.s32.totalorder %s177, 0
      %s180 = sadd.s32 %s179, 1
      %s181 = scalar_select %p178, %s179, %s180
      %p184 = pneg %p178
      %p185 = scmp.eq.s32.totalorder %s17, 1
      %p186 = por %p184, %p185
      %p187 = scmp.ne.s32.totalorder %s179, %s182
      %p188 = scmp.eq.s32.totalorder %s17, 0
      %p189 = por %p187, %p188
      %p190 = scmp.ne.s32.totalorder %s179, %s182
      %p191 = scmp.eq.s32.totalorder %s22, 1
      %p192 = por %p190, %p191
      %p193 = scmp.ne.s32.totalorder %s182, %s183
      %p194 = scmp.eq.s32.totalorder %s22, 0
      %p195 = por %p193, %p194
      %p196 = scmp.ne.s32.totalorder %s182, %s183
      %p197 = scmp.eq.s32.totalorder %s23, 1
      %p198 = por %p196, %p197
      %p200 = scmp.ne.s32.totalorder %s183, %s199
      %p201 = scmp.eq.s32.totalorder %s23, 0
      %p202 = por %p200, %p201
      %p203 = scmp.le.s32.totalorder 1, %s17
      %p204 = scmp.lt.s32.totalorder %s17, 3
      %p205 = pnand %p203, %p204
      %p206 = pneg %p205
      // Predicated region
      $region9: #{tpu_custom_call.1} parent=5 // pred_check
        _
      $region10: #{tpu_custom_call.1} parent=5 // pred_check_branch
        %208 = sbr.rel (%p205) target = $region12
      $region11: #{tpu_custom_call.1} parent=5 // pred_region
        %s209 = ssub.s32 %s17, 1
        // Predicated region
        $region13: #{tpu_custom_call.1} parent=11 // pred_check
          %p210 = pneg %p64
        $region14: #{tpu_custom_call.1} parent=11 // pred_check_branch
          %212 = sbr.rel (%p210) target = $region16
        $region15: #{tpu_custom_call.1} parent=11 // pred_region
          %s214 = ssub.s32 256, 256
          %215 = vsyncadd [#allocation3], %s214
          %s216 = sshll.u32 [#allocation2], 4
          %s217 = int_to_ptr.vmem [resolvable:$true] %s216
          %222 = dma.hbm_to_vmem [thread:$0]  %s1, 256, %s217, [#allocation3], 64, 64, 4
        $region16: #{tpu_custom_call.1} parent=11 // pred_fallthru
          _
        // Predicated region
        $region17: #{tpu_custom_call.1} parent=11 // pred_check
          %p223 = pneg %p85
        $region18: #{tpu_custom_call.1} parent=11 // pred_check_branch
          %225 = sbr.rel (%p223) target = $region20
        $region19: #{tpu_custom_call.1} parent=11 // pred_region
          _
        $region20: #{tpu_custom_call.1} parent=11 // pred_fallthru
          _
        // Predicated region
        $region21: #{tpu_custom_call.1} parent=11 // pred_check
          %p226 = pneg %p106
        $region22: #{tpu_custom_call.1} parent=11 // pred_check_branch
          %228 = sbr.rel (%p226) target = $region24
        $region23: #{tpu_custom_call.1} parent=11 // pred_region
          _
        $region24: #{tpu_custom_call.1} parent=11 // pred_fallthru
          _
        // Predicated region
        $region25: #{tpu_custom_call.1} parent=11 // pred_check
          %p229 = pneg %p127
        $region26: #{tpu_custom_call.1} parent=11 // pred_check_branch
          %231 = sbr.rel (%p229) target = $region28
        $region27: #{tpu_custom_call.1} parent=11 // pred_region
          _
        $region28: #{tpu_custom_call.1} parent=11 // pred_fallthru
          _
        // Predicated region
        $region29: #{tpu_custom_call.1} parent=11 // pred_check
          %p232 = pneg %p148
        $region30: #{tpu_custom_call.1} parent=11 // pred_check_branch
          %234 = sbr.rel (%p232) target = $region32
        $region31: #{tpu_custom_call.1} parent=11 // pred_region
          _
        $region32: #{tpu_custom_call.1} parent=11 // pred_fallthru
          _
        // Predicated region
        $region33: #{tpu_custom_call.1} parent=11 // pred_check
          %p235 = pneg %p169
        $region34: #{tpu_custom_call.1} parent=11 // pred_check_branch
          %237 = sbr.rel (%p235) target = $region36
        $region35: #{tpu_custom_call.1} parent=11 // pred_region
          _
        $region36: #{tpu_custom_call.1} parent=11 // pred_fallthru
          _
      $region12: #{tpu_custom_call.1} parent=5 // pred_fallthru
        _
      %p238 = scmp.lt.s32.totalorder %s17, 2
      // Predicated region
      $region37: #{tpu_custom_call.1} parent=5 // pred_check
        %p239 = pneg %p238
      $region38: #{tpu_custom_call.1} parent=5 // pred_check_branch
        %241 = sbr.rel (%p239) target = $region40
      $region39: #{tpu_custom_call.1} parent=5 // pred_region
        // Predicated region
        $region41: #{tpu_custom_call.1} parent=39 // pred_check
          %p242 = pneg %p37
        $region42: #{tpu_custom_call.1} parent=39 // pred_check_branch
          %244 = sbr.rel (%p242) target = $region44
        $region43: #{tpu_custom_call.1} parent=39 // pred_region
          %p245 = scmp.lt.s32.totalorder %s17, 1
          %s246 = scalar_select %p245, %s17, 1
          %s247 = smul.addr %s246, 8
          %s248 = scalar_lea.vmem %s0, %s247
        $region44: #{tpu_custom_call.1} parent=39 // pred_fallthru
          _
      $region40: #{tpu_custom_call.1} parent=5 // pred_fallthru
        _
      %p249 = scmp.le.s32.totalorder 1, %s17
      %p250 = scmp.lt.s32.totalorder %s17, 3
      %p251 = pnand %p249, %p250
      %p252 = pneg %p251
      // Predicated region
      $region45: #{tpu_custom_call.1} parent=5 // pred_check
        _
      $region46: #{tpu_custom_call.1} parent=5 // pred_check_branch
        %254 = sbr.rel (%p251) target = $region48
      $region47: #{tpu_custom_call.1} parent=5 // pred_region
        %s255 = ssub.s32 %s17, 1
        // Predicated region
        $region49: #{tpu_custom_call.1} parent=47 // pred_check
          %p256 = pneg %p64
        $region50: #{tpu_custom_call.1} parent=47 // pred_check_branch
          %258 = sbr.rel (%p256) target = $region52
        $region51: #{tpu_custom_call.1} parent=47 // pred_region
          %259 = dma.done [#allocation3], 256
        $region52: #{tpu_custom_call.1} parent=47 // pred_fallthru
          _
        %p260 = scmp.lt.s32.totalorder %s22, 1
        %s261 = scalar_select %p260, %s22, 1
        %s262 = smul.addr %s261, 8
        %s263 = scalar_lea.vmem %s0, %s262
        %p264 = pneg %p43
        %p265 = pneg %p40
        %p266 = pneg %p64
        %p267 = pneg %p61
        %p268 = pneg %p85
        %p269 = pneg %p82
        %p270 = pneg %p106
        %p271 = pneg %p103
        %p272 = pneg %p127
        %p273 = pneg %p124
        %p274 = pneg %p148
        %p275 = pneg %p145
        %p276 = pneg %p169
        %p277 = pneg %p166
        %p278 = pneg %p195
        %p279 = pneg %p192
        %s280 = sand.u32 %s182, 1
        %s281 = scalar_lea.sflag [#allocation4], %s280
        %s282 = sand.u32 %s182, 1
        %s283 = smul.addr %s282, 8
        %s284 = scalar_lea.vmem [#allocation5], %s283
        %p285 = scmp.lt.s32.totalorder %s22, 1
        %s286 = scalar_select %p285, %s22, 1
        %s287 = smul.addr %s286, 8
        %s288 = scalar_lea.vmem %s0, %s287
        %v290 = vld [vmem:[%s288] sm:$0xff]
        %v291 = vpack.c.bf16 %v290, %v290
        %v292 = vld [vmem:[#allocation2] sm:$0xf]
        %v293 = vld [vmem:[#allocation2 + $0x4] sm:$0xf]
        %v294 = vld [vmem:[#allocation2 + $0x8] sm:$0xf]
        %v295 = vld [vmem:[#allocation2 + $0xc] sm:$0xf]
        %v296 = vld [vmem:[%s2] sm:$0x1]
        %v298 = vlaneseq
        %v299 = vshrl.u32 %v298, 7
        %v300 = vsub.s32 0, %v299
        %v301 = vrot.slane %v296, %v300
        %v307 = vunpack.c.l.b16 %v292
        %v308 = vunpack.c.l.b16 %v293
        %v309 = vunpack.c.l.b16 %v294
        %v310 = vunpack.c.l.b16 %v295
        %v311 = vpack.c.b16 %v308, %v307
        %v312 = vpack.c.b16 %v310, %v309
        %vm315 = vcmask 261120
        %v317 = vsel %vm315, %v291, 0
        %319 = vmatprep.subr.bf16.mxu0 0
        %320 = vmatpush1.bf16.msra.mxu0 %v311
        %321 = vmatprep.subr.bf16.mxu0 0
        %322 = vmatpush1.bf16.msra.mxu0 %v312
        %323 = vmatprep.subr.bf16.mxu0 0
        %324 = vmatpush1.bf16.msra.mxu0 0
        %325 = vmatprep.subr.bf16.mxu0 0
        %326 = vmatpush1.bf16.msra.mxu0 0
        %327 = vmatprep.subr.bf16.mxu0 0
        %328 = vmatpush1.bf16.msra.mxu0 0
        %329 = vmatprep.subr.bf16.mxu0 0
        %330 = vmatpush1.bf16.msra.mxu0 0
        %331 = vmatprep.subr.bf16.mxu0 0
        %332 = vmatpush1.bf16.msra.mxu0 0
        %333 = vmatprep.subr.bf16.mxu0 0
        %334 = vmatpush1.bf16.msra.mxu0 0
        %335 = vmatprep.subr.bf16.mxu0 0
        %336 = vmatpush1.bf16.msra.mxu0 0
        %337 = vmatprep.subr.bf16.mxu0 0
        %338 = vmatpush1.bf16.msra.mxu0 0
        %339 = vmatprep.subr.bf16.mxu0 0
        %340 = vmatpush1.bf16.msra.mxu0 0
        %341 = vmatprep.subr.bf16.mxu0 0
        %342 = vmatpush1.bf16.msra.mxu0 0
        %343 = vmatprep.subr.bf16.mxu0 0
        %344 = vmatpush1.bf16.msra.mxu0 0
        %345 = vmatprep.subr.bf16.mxu0 0
        %346 = vmatpush1.bf16.msra.mxu0 0
        %347 = vmatprep.subr.bf16.mxu0 0
        %348 = vmatpush1.bf16.msra.mxu0 0
        %349 = vmatprep.subr.bf16.mxu0 0
        %350 = vmatpush1.bf16.msra.mxu0 0
        %351 = vmatprep.mubr.bf16.mxu0 0
        %352 = vmatmul.mubr.bf16.gmra.mrb[0].mxu0 %v317
        %v353 = vpop.f32.mrb[0].mxu0
        %v354 = vadd.f32 %v301, %v353
        %v355 = vpop.f32.mrb[0].mxu0
        %v356 = vpop.f32.mrb[0].mxu0
        %v357 = vpop.f32.mrb[0].mxu0
        %358 = vdwg.mxu0
        %v359 = vmax.f32 %v354, 0.0
        %v360 = vpack.c.bf16 %v359, %v359
        %v361 = vld [vmem:[%s3] sm:$0xf]
        %v362 = vld [vmem:[%s3 + $0x4] sm:$0xf]
        %v363 = vld [vmem:[%s3 + $0x8] sm:$0xf]
        %v364 = vld [vmem:[%s3 + $0xc] sm:$0xf]
        %v365 = vld [vmem:[%s3 + $0x10] sm:$0xf]
        %v366 = vld [vmem:[%s3 + $0x14] sm:$0xf]
        %v367 = vld [vmem:[%s3 + $0x18] sm:$0xf]
        %v368 = vld [vmem:[%s3 + $0x1c] sm:$0xf]
        %v369 = vld [vmem:[%s3 + $0x20] sm:$0xf]
        %v370 = vld [vmem:[%s3 + $0x24] sm:$0xf]
        %v371 = vld [vmem:[%s3 + $0x28] sm:$0xf]
        %v372 = vld [vmem:[%s3 + $0x2c] sm:$0xf]
        %v373 = vld [vmem:[%s3 + $0x30] sm:$0xf]
        %v374 = vld [vmem:[%s3 + $0x34] sm:$0xf]
        %v375 = vld [vmem:[%s3 + $0x38] sm:$0xf]
        %v376 = vld [vmem:[%s3 + $0x3c] sm:$0xf]
        %v377 = vld [vmem:[%s4] sm:$0x1]
        %v379 = vlaneseq
        %v380 = vshrl.u32 %v379, 7
        %v381 = vsub.s32 0, %v380
        %v382 = vrot.slane %v377, %v381
        %v400 = vunpack.c.l.b16 %v361
        %v401 = vunpack.c.l.b16 %v362
        %v402 = vunpack.c.l.b16 %v363
        %v403 = vunpack.c.l.b16 %v364
        %v404 = vunpack.c.l.b16 %v365
        %v405 = vunpack.c.l.b16 %v366
        %v406 = vunpack.c.l.b16 %v367
        %v407 = vunpack.c.l.b16 %v368
        %v408 = vunpack.c.l.b16 %v369
        %v409 = vunpack.c.l.b16 %v370
        %v410 = vunpack.c.l.b16 %v371
        %v411 = vunpack.c.l.b16 %v372
        %v412 = vunpack.c.l.b16 %v373
        %v413 = vunpack.c.l.b16 %v374
        %v414 = vunpack.c.l.b16 %v375
        %v415 = vunpack.c.l.b16 %v376
        %v416 = vpack.c.b16 %v401, %v400
        %v417 = vpack.c.b16 %v403, %v402
        %v418 = vpack.c.b16 %v405, %v404
        %v419 = vpack.c.b16 %v407, %v406
        %v420 = vpack.c.b16 %v409, %v408
        %v421 = vpack.c.b16 %v411, %v410
        %v422 = vpack.c.b16 %v413, %v412
        %v423 = vpack.c.b16 %v415, %v414
        %432 = vmatprep.subr.bf16.mxu0 0
        %433 = vmatpush1.bf16.msra.mxu0 %v416
        %434 = vmatprep.subr.bf16.mxu0 0
        %435 = vmatpush1.bf16.msra.mxu0 %v417
        %436 = vmatprep.subr.bf16.mxu0 0
        %437 = vmatpush1.bf16.msra.mxu0 %v418
        %438 = vmatprep.subr.bf16.mxu0 0
        %439 = vmatpush1.bf16.msra.mxu0 %v419
        %440 = vmatprep.subr.bf16.mxu0 0
        %441 = vmatpush1.bf16.msra.mxu0 %v420
        %442 = vmatprep.subr.bf16.mxu0 0
        %443 = vmatpush1.bf16.msra.mxu0 %v421
        %444 = vmatprep.subr.bf16.mxu0 0
        %445 = vmatpush1.bf16.msra.mxu0 %v422
        %446 = vmatprep.subr.bf16.mxu0 0
        %447 = vmatpush1.bf16.msra.mxu0 %v423
        %448 = vmatprep.subr.bf16.mxu0 0
        %449 = vmatpush1.bf16.msra.mxu0 0
        %450 = vmatprep.subr.bf16.mxu0 0
        %451 = vmatpush1.bf16.msra.mxu0 0
        %452 = vmatprep.subr.bf16.mxu0 0
        %453 = vmatpush1.bf16.msra.mxu0 0
        %454 = vmatprep.subr.bf16.mxu0 0
        %455 = vmatpush1.bf16.msra.mxu0 0
        %456 = vmatprep.subr.bf16.mxu0 0
        %457 = vmatpush1.bf16.msra.mxu0 0
        %458 = vmatprep.subr.bf16.mxu0 0
        %459 = vmatpush1.bf16.msra.mxu0 0
        %460 = vmatprep.subr.bf16.mxu0 0
        %461 = vmatpush1.bf16.msra.mxu0 0
        %462 = vmatprep.subr.bf16.mxu0 0
        %463 = vmatpush1.bf16.msra.mxu0 0
        %464 = vmatprep.mubr.bf16.mxu0 0
        %465 = vmatmul.mubr.bf16.gmra.mrb[0].mxu0 %v360
        %v466 = vpop.f32.mrb[0].mxu0
        %v467 = vadd.f32 %v382, %v466
        %v468 = vpop.f32.mrb[0].mxu0
        %v469 = vpop.f32.mrb[0].mxu0
        %v470 = vpop.f32.mrb[0].mxu0
        %471 = vdwg.mxu0
        %v472 = vmax.f32 %v467, 0.0
        %v473 = vpack.c.bf16 %v472, %v472
        %v474 = vld [vmem:[%s5] sm:$0xf]
        %v475 = vld [vmem:[%s5 + $0x4] sm:$0xf]
        %v476 = vld [vmem:[%s5 + $0x8] sm:$0xf]
        %v477 = vld [vmem:[%s5 + $0xc] sm:$0xf]
        %v478 = vld [vmem:[%s5 + $0x10] sm:$0xf]
        %v479 = vld [vmem:[%s5 + $0x14] sm:$0xf]
        %v480 = vld [vmem:[%s5 + $0x18] sm:$0xf]
        %v481 = vld [vmem:[%s5 + $0x1c] sm:$0xf]
        %v482 = vld [vmem:[%s5 + $0x20] sm:$0xf]
        %v483 = vld [vmem:[%s5 + $0x24] sm:$0xf]
        %v484 = vld [vmem:[%s5 + $0x28] sm:$0xf]
        %v485 = vld [vmem:[%s5 + $0x2c] sm:$0xf]
        %v486 = vld [vmem:[%s5 + $0x30] sm:$0xf]
        %v487 = vld [vmem:[%s5 + $0x34] sm:$0xf]
        %v488 = vld [vmem:[%s5 + $0x38] sm:$0xf]
        %v489 = vld [vmem:[%s5 + $0x3c] sm:$0xf]
        %v490 = vld [vmem:[%s6] sm:$0x1]
        %v492 = vlaneseq
        %v493 = vshrl.u32 %v492, 7
        %v494 = vsub.s32 0, %v493
        %v495 = vrot.slane %v490, %v494
        %v513 = vunpack.c.l.b16 %v474
        %v514 = vunpack.c.l.b16 %v475
        %v515 = vunpack.c.l.b16 %v476
        %v516 = vunpack.c.l.b16 %v477
        %v517 = vunpack.c.l.b16 %v478
        %v518 = vunpack.c.l.b16 %v479
        %v519 = vunpack.c.l.b16 %v480
        %v520 = vunpack.c.l.b16 %v481
        %v521 = vunpack.c.l.b16 %v482
        %v522 = vunpack.c.l.b16 %v483
        %v523 = vunpack.c.l.b16 %v484
        %v524 = vunpack.c.l.b16 %v485
        %v525 = vunpack.c.l.b16 %v486
        %v526 = vunpack.c.l.b16 %v487
        %v527 = vunpack.c.l.b16 %v488
        %v528 = vunpack.c.l.b16 %v489
        %v529 = vpack.c.b16 %v514, %v513
        %v530 = vpack.c.b16 %v516, %v515
        %v531 = vpack.c.b16 %v518, %v517
        %v532 = vpack.c.b16 %v520, %v519
        %v533 = vpack.c.b16 %v522, %v521
        %v534 = vpack.c.b16 %v524, %v523
        %v535 = vpack.c.b16 %v526, %v525
        %v536 = vpack.c.b16 %v528, %v527
        %545 = vmatprep.subr.bf16.mxu0 0
        %546 = vmatpush1.bf16.msra.mxu0 %v529
        %547 = vmatprep.subr.bf16.mxu0 0
        %548 = vmatpush1.bf16.msra.mxu0 %v530
        %549 = vmatprep.subr.bf16.mxu0 0
        %550 = vmatpush1.bf16.msra.mxu0 %v531
        %551 = vmatprep.subr.bf16.mxu0 0
        %552 = vmatpush1.bf16.msra.mxu0 %v532
        %553 = vmatprep.subr.bf16.mxu0 0
        %554 = vmatpush1.bf16.msra.mxu0 %v533
        %555 = vmatprep.subr.bf16.mxu0 0
        %556 = vmatpush1.bf16.msra.mxu0 %v534
        %557 = vmatprep.subr.bf16.mxu0 0
        %558 = vmatpush1.bf16.msra.mxu0 %v535
        %559 = vmatprep.subr.bf16.mxu0 0
        %560 = vmatpush1.bf16.msra.mxu0 %v536
        %561 = vmatprep.subr.bf16.mxu0 0
        %562 = vmatpush1.bf16.msra.mxu0 0
        %563 = vmatprep.subr.bf16.mxu0 0
        %564 = vmatpush1.bf16.msra.mxu0 0
        %565 = vmatprep.subr.bf16.mxu0 0
        %566 = vmatpush1.bf16.msra.mxu0 0
        %567 = vmatprep.subr.bf16.mxu0 0
        %568 = vmatpush1.bf16.msra.mxu0 0
        %569 = vmatprep.subr.bf16.mxu0 0
        %570 = vmatpush1.bf16.msra.mxu0 0
        %571 = vmatprep.subr.bf16.mxu0 0
        %572 = vmatpush1.bf16.msra.mxu0 0
        %573 = vmatprep.subr.bf16.mxu0 0
        %574 = vmatpush1.bf16.msra.mxu0 0
        %575 = vmatprep.subr.bf16.mxu0 0
        %576 = vmatpush1.bf16.msra.mxu0 0
        %577 = vmatprep.mubr.bf16.mxu0 0
        %578 = vmatmul.mubr.bf16.gmra.mrb[0].mxu0 %v473
        %v579 = vpop.f32.mrb[0].mxu0
        %v580 = vadd.f32 %v495, %v579
        %v581 = vpop.f32.mrb[0].mxu0
        %v582 = vpop.f32.mrb[0].mxu0
        %v583 = vpop.f32.mrb[0].mxu0
        %584 = vdwg.mxu0
        %vm585 = vcmask 130048
        %586 = vst.msk [vmem:[%s284] sm:$0xff] %vm585, %v580
        %s587 = sand.u32 %s182, 1
        %s588 = scalar_lea.sflag [#allocation4], %s587
        %s589 = sand.u32 %s182, 1
        %s590 = smul.addr %s589, 8
        %s591 = scalar_lea.vmem [#allocation5], %s590
        // Predicated region
        $region53: #{tpu_custom_call.1} parent=47 // pred_check
          %p592 = pneg %p192
        $region54: #{tpu_custom_call.1} parent=47 // pred_check_branch
          %594 = sbr.rel (%p592) target = $region56
        $region55: #{tpu_custom_call.1} parent=47 // pred_region
          %s596 = ssub.s32 128, 128
          %597 = vsyncadd %s588, %s596
          %s598 = smul.addr %s22, 128
          %s599 = scalar_lea.hbm %s7, %s598
          %s601 = sshll.u32 %s591, 4
          %s602 = int_to_ptr.vmem [resolvable:$true] %s601
          %604 = dma.vmem_to_hbm [thread:$0]  %s602, 128, %s599, %s588
        $region56: #{tpu_custom_call.1} parent=47 // pred_fallthru
          _
      $region48: #{tpu_custom_call.1} parent=5 // pred_fallthru
        _
      %p605 = scmp.le.s32.totalorder 2, %s17
      // Predicated region
      $region57: #{tpu_custom_call.1} parent=5 // pred_check
        %p606 = pneg %p605
      $region58: #{tpu_custom_call.1} parent=5 // pred_check_branch
        %608 = sbr.rel (%p606) target = $region60
      $region59: #{tpu_custom_call.1} parent=5 // pred_region
        %s609 = ssub.s32 %s17, 2
        // Predicated region
        $region61: #{tpu_custom_call.1} parent=59 // pred_check
          %p610 = pneg %p198
        $region62: #{tpu_custom_call.1} parent=59 // pred_check_branch
          %612 = sbr.rel (%p610) target = $region64
        $region63: #{tpu_custom_call.1} parent=59 // pred_region
          %s613 = sand.u32 %s183, 1
          %s614 = scalar_lea.sflag [#allocation4], %s613
          %s615 = sand.u32 %s183, 1
          %s616 = smul.addr %s615, 8
          %s617 = scalar_lea.vmem [#allocation5], %s616
          %618 = dma.done %s614, 128
        $region64: #{tpu_custom_call.1} parent=59 // pred_fallthru
          _
      $region60: #{tpu_custom_call.1} parent=5 // pred_fallthru
        _
    $region6: #{tpu_custom_call.1} parent=1 // loop_footer
      %s21 = sadd.s32 1, %s17
    $region7: #{tpu_custom_call.1} parent=1 // loop_footer_branch
      %16 = sbr.rel target = $region3
    $region8: #{tpu_custom_call.1} parent=1 // loop_exit
      _
    %619 = vsyncpa [#allocation3], 1
    %s620 = scalar_lea.sflag [#allocation3], 1
    %621 = vsyncpa %s620, 1
    %622 = vsyncpa [#allocation4], 1
    %s623 = scalar_lea.sflag [#allocation4], 1
    %624 = vsyncpa %s623, 1

// kernel: tpu_custom_call.1
$region0: #{tpu_custom_call.1}
  #allocation0 [shape = 'u32[]', space=smem, size = 0x4, offset = 0x4, fixed_abs, tag = 'smem constant byte address 0x4 - core index']
  #allocation1 [shape = 'u32[144,128]{1,0:T(1,128)}', space=vmem, size = 0x12000, scoped, tag = 'internal scratch']
  %s0 = inlined_call_operand.vmem [shape: f32[16,32], index: 0, kind: input, shape index: {}]
  %s1 = inlined_call_operand.hbm [shape: bf16[32,128], index: 1, kind: input, shape index: {}]
  %s2 = inlined_call_operand.vmem [shape: f32[1,128], index: 2, kind: input, shape index: {}]
  %s3 = inlined_call_operand.vmem [shape: bf16[128,128], index: 3, kind: input, shape index: {}]
  %s4 = inlined_call_operand.vmem [shape: f32[1,128], index: 4, kind: input, shape index: {}]
  %s5 = inlined_call_operand.vmem [shape: bf16[128,16], index: 5, kind: input, shape index: {}]
  %s6 = inlined_call_operand.vmem [shape: f32[1,16], index: 6, kind: input, shape index: {}]
  %s7 = inlined_call_operand.hbm [shape: f32[16,16], index: 7, kind: output, shape index: {}]
  %s8 = sld [smem:[#allocation0]]
  $region65: #{tpu_custom_call.1} parent=0
    _
  %s10 = ssub.s32 1, %s8
  %s11 = scalar_select 0, %s10, %s8
  $region1: #{tpu_custom_call.1} parent=0
    #allocation2 [shape = 'u8[8192]{0}', space=vmem, size = 0x2000, scoped, tag = 'input window, operand 1, single buffered']
    #allocation3 [shape = 's32[2]{0}', space=sflag, size = 0x8, scoped, tag = 'scoped memory for tpu_custom_call.1']
    #allocation4 [shape = 's32[2]{0}', space=sflag, size = 0x8, scoped, tag = 'scoped memory for tpu_custom_call.1']
    #allocation5 [shape = 'u8[8192]{0}', space=vmem, size = 0x2000, scoped, tag = 'output window, operand 0']
    %12 = vsyncpa [#allocation3], 0
    %13 = vsyncpa [#allocation4], 0
    %s14 = scalar_lea.sflag [#allocation4], 1
    %15 = vsyncpa %s14, 0
    loop: start=0, step=1, limit=4
    $region2: #{tpu_custom_call.1} parent=1 // loop_pre_header
      _
    $region3: #{tpu_custom_call.1} parent=1 // loop_header
      %s17 = sphi 0, %s21
      %p18 = scmp.ge.s32.totalorder %s17, 4
      %s27 = sphi 0, %s29
      %s30 = sphi 0, %s27
      %s31 = sphi 0, %s30
      %s47 = sphi 0, %s31
      %s51 = sphi 0, %s51
      %s53 = sphi 0, %s51
      %s54 = sphi 0, %s53
      %s68 = sphi 0, %s54
      %s72 = sphi 0, %s72
      %s74 = sphi 0, %s72
      %s75 = sphi 0, %s74
      %s89 = sphi 0, %s75
      %s93 = sphi 0, %s93
      %s95 = sphi 0, %s93
      %s96 = sphi 0, %s95
      %s110 = sphi 0, %s96
      %s114 = sphi 0, %s114
      %s116 = sphi 0, %s114
      %s117 = sphi 0, %s116
      %s131 = sphi 0, %s117
      %s135 = sphi 0, %s135
      %s137 = sphi 0, %s135
      %s138 = sphi 0, %s137
      %s152 = sphi 0, %s138
      %s156 = sphi 0, %s156
      %s158 = sphi 0, %s156
      %s159 = sphi 0, %s158
      %s173 = sphi 0, %s159
      %s179 = sphi 0, %s181
      %s182 = sphi 0, %s179
      %s183 = sphi 0, %s182
      %s199 = sphi 0, %s183
    $region4: #{tpu_custom_call.1} parent=1 // loop_header_branch
      %20 = sbr.rel (%p18) target = $region8
    $region5: #{tpu_custom_call.1} parent=1 // loop_body
      %s22 = ssub.s32 %s17, 1
      %s23 = ssub.s32 %s17, 2
      %s24 = sadd.s32 %s17, 1
      %s25 = ssub.s32 %s17, %s24
      %p26 = scmp.eq.s32.totalorder %s25, 0
      %s28 = sadd.s32 %s27, 1
      %s29 = scalar_select %p26, %s27, %s28
      %p32 = pneg %p26
      %p33 = scmp.eq.s32.totalorder %s17, 1
      %p34 = por %p32, %p33
      %p35 = scmp.ne.s32.totalorder %s27, %s30
      %p36 = scmp.eq.s32.totalorder %s17, 0
      %p37 = por %p35, %p36
      %p38 = scmp.ne.s32.totalorder %s27, %s30
      %p39 = scmp.eq.s32.totalorder %s22, 1
      %p40 = por %p38, %p39
      %p41 = scmp.ne.s32.totalorder %s30, %s31
      %p42 = scmp.eq.s32.totalorder %s22, 0
      %p43 = por %p41, %p42
      %p44 = scmp.ne.s32.totalorder %s30, %s31
      %p45 = scmp.eq.s32.totalorder %s23, 1
      %p46 = por %p44, %p45
      %p48 = scmp.ne.s32.totalorder %s31, %s47
      %p49 = scmp.eq.s32.totalorder %s23, 0
      %p50 = por %p48, %p49
      %s52 = sadd.s32 %s51, 1
      %p55 = scmp.eq.s32.totalorder %s17, 1
      %p56 = scmp.ne.s32.totalorder %s51, %s53
      %p57 = scmp.eq.s32.totalorder %s17, 0
      %p58 = por %p56, %p57
      %p59 = scmp.ne.s32.totalorder %s51, %s53
      %p60 = scmp.eq.s32.totalorder %s22, 1
      %p61 = por %p59, %p60
      %p62 = scmp.ne.s32.totalorder %s53, %s54
      %p63 = scmp.eq.s32.totalorder %s22, 0
      %p64 = por %p62, %p63
      %p65 = scmp.ne.s32.totalorder %s53, %s54
      %p66 = scmp.eq.s32.totalorder %s23, 1
      %p67 = por %p65, %p66
      %p69 = scmp.ne.s32.totalorder %s54, %s68
      %p70 = scmp.eq.s32.totalorder %s23, 0
      %p71 = por %p69, %p70
      %s73 = sadd.s32 %s72, 1
      %p76 = scmp.eq.s32.totalorder %s17, 1
      %p77 = scmp.ne.s32.totalorder %s72, %s74
      %p78 = scmp.eq.s32.totalorder %s17, 0
      %p79 = por %p77, %p78
      %p80 = scmp.ne.s32.totalorder %s72, %s74
      %p81 = scmp.eq.s32.totalorder %s22, 1
      %p82 = por %p80, %p81
      %p83 = scmp.ne.s32.totalorder %s74, %s75
      %p84 = scmp.eq.s32.totalorder %s22, 0
      %p85 = por %p83, %p84
      %p86 = scmp.ne.s32.totalorder %s74, %s75
      %p87 = scmp.eq.s32.totalorder %s23, 1
      %p88 = por %p86, %p87
      %p90 = scmp.ne.s32.totalorder %s75, %s89
      %p91 = scmp.eq.s32.totalorder %s23, 0
      %p92 = por %p90, %p91
      %s94 = sadd.s32 %s93, 1
      %p97 = scmp.eq.s32.totalorder %s17, 1
      %p98 = scmp.ne.s32.totalorder %s93, %s95
      %p99 = scmp.eq.s32.totalorder %s17, 0
      %p100 = por %p98, %p99
      %p101 = scmp.ne.s32.totalorder %s93, %s95
      %p102 = scmp.eq.s32.totalorder %s22, 1
      %p103 = por %p101, %p102
      %p104 = scmp.ne.s32.totalorder %s95, %s96
      %p105 = scmp.eq.s32.totalorder %s22, 0
      %p106 = por %p104, %p105
      %p107 = scmp.ne.s32.totalorder %s95, %s96
      %p108 = scmp.eq.s32.totalorder %s23, 1
      %p109 = por %p107, %p108
      %p111 = scmp.ne.s32.totalorder %s96, %s110
      %p112 = scmp.eq.s32.totalorder %s23, 0
      %p113 = por %p111, %p112
      %s115 = sadd.s32 %s114, 1
      %p118 = scmp.eq.s32.totalorder %s17, 1
      %p119 = scmp.ne.s32.totalorder %s114, %s116
      %p120 = scmp.eq.s32.totalorder %s17, 0
      %p121 = por %p119, %p120
      %p122 = scmp.ne.s32.totalorder %s114, %s116
      %p123 = scmp.eq.s32.totalorder %s22, 1
      %p124 = por %p122, %p123
      %p125 = scmp.ne.s32.totalorder %s116, %s117
      %p126 = scmp.eq.s32.totalorder %s22, 0
      %p127 = por %p125, %p126
      %p128 = scmp.ne.s32.totalorder %s116, %s117
      %p129 = scmp.eq.s32.totalorder %s23, 1
      %p130 = por %p128, %p129
      %p132 = scmp.ne.s32.totalorder %s117, %s131
      %p133 = scmp.eq.s32.totalorder %s23, 0
      %p134 = por %p132, %p133
      %s136 = sadd.s32 %s135, 1
      %p139 = scmp.eq.s32.totalorder %s17, 1
      %p140 = scmp.ne.s32.totalorder %s135, %s137
      %p141 = scmp.eq.s32.totalorder %s17, 0
      %p142 = por %p140, %p141
      %p143 = scmp.ne.s32.totalorder %s135, %s137
      %p144 = scmp.eq.s32.totalorder %s22, 1
      %p145 = por %p143, %p144
      %p146 = scmp.ne.s32.totalorder %s137, %s138
      %p147 = scmp.eq.s32.totalorder %s22, 0
      %p148 = por %p146, %p147
      %p149 = scmp.ne.s32.totalorder %s137, %s138
      %p150 = scmp.eq.s32.totalorder %s23, 1
      %p151 = por %p149, %p150
      %p153 = scmp.ne.s32.totalorder %s138, %s152
      %p154 = scmp.eq.s32.totalorder %s23, 0
      %p155 = por %p153, %p154
      %s157 = sadd.s32 %s156, 1
      %p160 = scmp.eq.s32.totalorder %s17, 1
      %p161 = scmp.ne.s32.totalorder %s156, %s158
      %p162 = scmp.eq.s32.totalorder %s17, 0
      %p163 = por %p161, %p162
      %p164 = scmp.ne.s32.totalorder %s156, %s158
      %p165 = scmp.eq.s32.totalorder %s22, 1
      %p166 = por %p164, %p165
      %p167 = scmp.ne.s32.totalorder %s158, %s159
      %p168 = scmp.eq.s32.totalorder %s22, 0
      %p169 = por %p167, %p168
      %p170 = scmp.ne.s32.totalorder %s158, %s159
      %p171 = scmp.eq.s32.totalorder %s23, 1
      %p172 = por %p170, %p171
      %p174 = scmp.ne.s32.totalorder %s159, %s173
      %p175 = scmp.eq.s32.totalorder %s23, 0
      %p176 = por %p174, %p175
      %s177 = ssub.s32 %s17, %s24
      %p178 = scmp.eq.s32.totalorder %s177, 0
      %s180 = sadd.s32 %s179, 1
      %s181 = scalar_select %p178, %s179, %s180
      %p184 = pneg %p178
      %p185 = scmp.eq.s32.totalorder %s17, 1
      %p186 = por %p184, %p185
      %p187 = scmp.ne.s32.totalorder %s179, %s182
      %p188 = scmp.eq.s32.totalorder %s17, 0
      %p189 = por %p187, %p188
      %p190 = scmp.ne.s32.totalorder %s179, %s182
      %p191 = scmp.eq.s32.totalorder %s22, 1
      %p192 = por %p190, %p191
      %p193 = scmp.ne.s32.totalorder %s182, %s183
      %p194 = scmp.eq.s32.totalorder %s22, 0
      %p195 = por %p193, %p194
      %p196 = scmp.ne.s32.totalorder %s182, %s183
      %p197 = scmp.eq.s32.totalorder %s23, 1
      %p198 = por %p196, %p197
      %p200 = scmp.ne.s32.totalorder %s183, %s199
      %p201 = scmp.eq.s32.totalorder %s23, 0
      %p202 = por %p200, %p201
      %p203 = scmp.le.s32.totalorder 1, %s17
      %p204 = scmp.lt.s32.totalorder %s17, 3
      %p205 = pnand %p203, %p204
      %p206 = pneg %p205
      // Predicated region
      $region9: #{tpu_custom_call.1} parent=5 // pred_check
        _
      $region10: #{tpu_custom_call.1} parent=5 // pred_check_branch
        %208 = sbr.rel (%p205) target = $region12
      $region11: #{tpu_custom_call.1} parent=5 // pred_region
        %s209 = ssub.s32 %s17, 1
        // Predicated region
        $region13: #{tpu_custom_call.1} parent=11 // pred_check
          %p210 = pneg %p64
        $region14: #{tpu_custom_call.1} parent=11 // pred_check_branch
          %212 = sbr.rel (%p210) target = $region16
        $region15: #{tpu_custom_call.1} parent=11 // pred_region
          %s214 = ssub.s32 256, 256
          %215 = vsyncadd [#allocation3], %s214
          %s216 = sshll.u32 [#allocation2], 4
          %s217 = int_to_ptr.vmem [resolvable:$true] %s216
          %222 = dma.hbm_to_vmem [thread:$0]  %s1, 256, %s217, [#allocation3], 64, 64, 4
        $region16: #{tpu_custom_call.1} parent=11 // pred_fallthru
          _
        // Predicated region
        $region17: #{tpu_custom_call.1} parent=11 // pred_check
          %p223 = pneg %p85
        $region18: #{tpu_custom_call.1} parent=11 // pred_check_branch
          %225 = sbr.rel (%p223) target = $region20
        $region19: #{tpu_custom_call.1} parent=11 // pred_region
          _
        $region20: #{tpu_custom_call.1} parent=11 // pred_fallthru
          _
        // Predicated region
        $region21: #{tpu_custom_call.1} parent=11 // pred_check
          %p226 = pneg %p106
        $region22: #{tpu_custom_call.1} parent=11 // pred_check_branch
          %228 = sbr.rel (%p226) target = $region24
        $region23: #{tpu_custom_call.1} parent=11 // pred_region
          _
        $region24: #{tpu_custom_call.1} parent=11 // pred_fallthru
          _
        // Predicated region
        $region25: #{tpu_custom_call.1} parent=11 // pred_check
          %p229 = pneg %p127
        $region26: #{tpu_custom_call.1} parent=11 // pred_check_branch
          %231 = sbr.rel (%p229) target = $region28
        $region27: #{tpu_custom_call.1} parent=11 // pred_region
          _
        $region28: #{tpu_custom_call.1} parent=11 // pred_fallthru
          _
        // Predicated region
        $region29: #{tpu_custom_call.1} parent=11 // pred_check
          %p232 = pneg %p148
        $region30: #{tpu_custom_call.1} parent=11 // pred_check_branch
          %234 = sbr.rel (%p232) target = $region32
        $region31: #{tpu_custom_call.1} parent=11 // pred_region
          _
        $region32: #{tpu_custom_call.1} parent=11 // pred_fallthru
          _
        // Predicated region
        $region33: #{tpu_custom_call.1} parent=11 // pred_check
          %p235 = pneg %p169
        $region34: #{tpu_custom_call.1} parent=11 // pred_check_branch
          %237 = sbr.rel (%p235) target = $region36
        $region35: #{tpu_custom_call.1} parent=11 // pred_region
          _
        $region36: #{tpu_custom_call.1} parent=11 // pred_fallthru
          _
      $region12: #{tpu_custom_call.1} parent=5 // pred_fallthru
        _
      %p238 = scmp.lt.s32.totalorder %s17, 2
      // Predicated region
      $region37: #{tpu_custom_call.1} parent=5 // pred_check
        %p239 = pneg %p238
      $region38: #{tpu_custom_call.1} parent=5 // pred_check_branch
        %241 = sbr.rel (%p239) target = $region40
      $region39: #{tpu_custom_call.1} parent=5 // pred_region
        // Predicated region
        $region41: #{tpu_custom_call.1} parent=39 // pred_check
          %p242 = pneg %p37
        $region42: #{tpu_custom_call.1} parent=39 // pred_check_branch
          %244 = sbr.rel (%p242) target = $region44
        $region43: #{tpu_custom_call.1} parent=39 // pred_region
          %p245 = scmp.lt.s32.totalorder %s17, 1
          %s246 = scalar_select %p245, %s17, 1
          %s247 = smul.addr %s246, 8
          %s248 = scalar_lea.vmem %s0, %s247
        $region44: #{tpu_custom_call.1} parent=39 // pred_fallthru
          _
      $region40: #{tpu_custom_call.1} parent=5 // pred_fallthru
        _
      %p249 = scmp.le.s32.totalorder 1, %s17
      %p250 = scmp.lt.s32.totalorder %s17, 3
      %p251 = pnand %p249, %p250
      %p252 = pneg %p251
      // Predicated region
      $region45: #{tpu_custom_call.1} parent=5 // pred_check
        _
      $region46: #{tpu_custom_call.1} parent=5 // pred_check_branch
        %254 = sbr.rel (%p251) target = $region48
      $region47: #{tpu_custom_call.1} parent=5 // pred_region
        %s255 = ssub.s32 %s17, 1
        // Predicated region
        $region49: #{tpu_custom_call.1} parent=47 // pred_check
          %p256 = pneg %p64
        $region50: #{tpu_custom_call.1} parent=47 // pred_check_branch
          %258 = sbr.rel (%p256) target = $region52
        $region51: #{tpu_custom_call.1} parent=47 // pred_region
          %259 = dma.done [#allocation3], 256
        $region52: #{tpu_custom_call.1} parent=47 // pred_fallthru
          _
        %p260 = scmp.lt.s32.totalorder %s22, 1
        %s261 = scalar_select %p260, %s22, 1
        %s262 = smul.addr %s261, 8
        %s263 = scalar_lea.vmem %s0, %s262
        %p264 = pneg %p43
        %p265 = pneg %p40
        %p266 = pneg %p64
        %p267 = pneg %p61
        %p268 = pneg %p85
        %p269 = pneg %p82
        %p270 = pneg %p106
        %p271 = pneg %p103
        %p272 = pneg %p127
        %p273 = pneg %p124
        %p274 = pneg %p148
        %p275 = pneg %p145
        %p276 = pneg %p169
        %p277 = pneg %p166
        %p278 = pneg %p195
        %p279 = pneg %p192
        %s280 = sand.u32 %s182, 1
        %s281 = scalar_lea.sflag [#allocation4], %s280
        %s282 = sand.u32 %s182, 1
        %s283 = smul.addr %s282, 8
        %s284 = scalar_lea.vmem [#allocation5], %s283
        %p285 = scmp.lt.s32.totalorder %s22, 1
        %s286 = scalar_select %p285, %s22, 1
        %s287 = smul.addr %s286, 8
        %s288 = scalar_lea.vmem %s0, %s287
        %v290 = vld [vmem:[%s288] sm:$0xff]
        %v291 = vpack.c.bf16 %v290, %v290
        %v292 = vld [vmem:[#allocation2] sm:$0xf]
        %v293 = vld [vmem:[#allocation2 + $0x4] sm:$0xf]
        %v294 = vld [vmem:[#allocation2 + $0x8] sm:$0xf]
        %v295 = vld [vmem:[#allocation2 + $0xc] sm:$0xf]
        %v296 = vld [vmem:[%s2] sm:$0x1]
        %v298 = vlaneseq
        %v299 = vshrl.u32 %v298, 7
        %v300 = vsub.s32 0, %v299
        %v301 = vrot.slane %v296, %v300
        %v307 = vunpack.c.l.b16 %v292
        %v308 = vunpack.c.l.b16 %v293
        %v309 = vunpack.c.l.b16 %v294
        %v310 = vunpack.c.l.b16 %v295
        %v311 = vpack.c.b16 %v308, %v307
        %v312 = vpack.c.b16 %v310, %v309
        %vm315 = vcmask 261120
        %v317 = vsel %vm315, %v291, 0
        %319 = vmatprep.subr.bf16.mxu0 0
        %320 = vmatpush1.bf16.msra.mxu0 %v311
        %321 = vmatprep.subr.bf16.mxu0 0
        %322 = vmatpush1.bf16.msra.mxu0 %v312
        %323 = vmatprep.subr.bf16.mxu0 0
        %324 = vmatpush1.bf16.msra.mxu0 0
        %325 = vmatprep.subr.bf16.mxu0 0
        %326 = vmatpush1.bf16.msra.mxu0 0
        %327 = vmatprep.subr.bf16.mxu0 0
        %328 = vmatpush1.bf16.msra.mxu0 0
        %329 = vmatprep.subr.bf16.mxu0 0
        %330 = vmatpush1.bf16.msra.mxu0 0
        %331 = vmatprep.subr.bf16.mxu0 0
        %332 = vmatpush1.bf16.msra.mxu0 0
        %333 = vmatprep.subr.bf16.mxu0 0
        %334 = vmatpush1.bf16.msra.mxu0 0
        %335 = vmatprep.subr.bf16.mxu0 0
        %336 = vmatpush1.bf16.msra.mxu0 0
        %337 = vmatprep.subr.bf16.mxu0 0
        %338 = vmatpush1.bf16.msra.mxu0 0
        %339 = vmatprep.subr.bf16.mxu0 0
        %340 = vmatpush1.bf16.msra.mxu0 0
        %341 = vmatprep.subr.bf16.mxu0 0
        %342 = vmatpush1.bf16.msra.mxu0 0
        %343 = vmatprep.subr.bf16.mxu0 0
        %344 = vmatpush1.bf16.msra.mxu0 0
        %345 = vmatprep.subr.bf16.mxu0 0
        %346 = vmatpush1.bf16.msra.mxu0 0
        %347 = vmatprep.subr.bf16.mxu0 0
        %348 = vmatpush1.bf16.msra.mxu0 0
        %349 = vmatprep.subr.bf16.mxu0 0
        %350 = vmatpush1.bf16.msra.mxu0 0
        %351 = vmatprep.mubr.bf16.mxu0 0
        %352 = vmatmul.mubr.bf16.gmra.mrb[0].mxu0 %v317
        %v353 = vpop.f32.mrb[0].mxu0
        %v354 = vadd.f32 %v301, %v353
        %v355 = vpop.f32.mrb[0].mxu0
        %v356 = vpop.f32.mrb[0].mxu0
        %v357 = vpop.f32.mrb[0].mxu0
        %358 = vdwg.mxu0
        %v359 = vmax.f32 %v354, 0.0
        %v360 = vpack.c.bf16 %v359, %v359
        %v361 = vld [vmem:[%s3] sm:$0xf]
        %v362 = vld [vmem:[%s3 + $0x4] sm:$0xf]
        %v363 = vld [vmem:[%s3 + $0x8] sm:$0xf]
        %v364 = vld [vmem:[%s3 + $0xc] sm:$0xf]
        %v365 = vld [vmem:[%s3 + $0x10] sm:$0xf]
        %v366 = vld [vmem:[%s3 + $0x14] sm:$0xf]
        %v367 = vld [vmem:[%s3 + $0x18] sm:$0xf]
        %v368 = vld [vmem:[%s3 + $0x1c] sm:$0xf]
        %v369 = vld [vmem:[%s3 + $0x20] sm:$0xf]
        %v370 = vld [vmem:[%s3 + $0x24] sm:$0xf]
        %v371 = vld [vmem:[%s3 + $0x28] sm:$0xf]
        %v372 = vld [vmem:[%s3 + $0x2c] sm:$0xf]
        %v373 = vld [vmem:[%s3 + $0x30] sm:$0xf]
        %v374 = vld [vmem:[%s3 + $0x34] sm:$0xf]
        %v375 = vld [vmem:[%s3 + $0x38] sm:$0xf]
        %v376 = vld [vmem:[%s3 + $0x3c] sm:$0xf]
        %v377 = vld [vmem:[%s4] sm:$0x1]
        %v379 = vlaneseq
        %v380 = vshrl.u32 %v379, 7
        %v381 = vsub.s32 0, %v380
        %v382 = vrot.slane %v377, %v381
        %v400 = vunpack.c.l.b16 %v361
        %v401 = vunpack.c.l.b16 %v362
        %v402 = vunpack.c.l.b16 %v363
        %v403 = vunpack.c.l.b16 %v364
        %v404 = vunpack.c.l.b16 %v365
        %v405 = vunpack.c.l.b16 %v366
        %v406 = vunpack.c.l.b16 %v367
        %v407 = vunpack.c.l.b16 %v368
        %v408 = vunpack.c.l.b16 %v369
        %v409 = vunpack.c.l.b16 %v370
        %v410 = vunpack.c.l.b16 %v371
        %v411 = vunpack.c.l.b16 %v372
        %v412 = vunpack.c.l.b16 %v373
        %v413 = vunpack.c.l.b16 %v374
        %v414 = vunpack.c.l.b16 %v375
        %v415 = vunpack.c.l.b16 %v376
        %v416 = vpack.c.b16 %v401, %v400
        %v417 = vpack.c.b16 %v403, %v402
        %v418 = vpack.c.b16 %v405, %v404
        %v419 = vpack.c.b16 %v407, %v406
        %v420 = vpack.c.b16 %v409, %v408
        %v421 = vpack.c.b16 %v411, %v410
        %v422 = vpack.c.b16 %v413, %v412
        %v423 = vpack.c.b16 %v415, %v414
        %432 = vmatprep.subr.bf16.mxu0 0
        %433 = vmatpush1.bf16.msra.mxu0 %v416
        %434 = vmatprep.subr.bf16.mxu0 0
        %435 = vmatpush1.bf16.msra.mxu0 %v417
        %436 = vmatprep.subr.bf16.mxu0 0
        %437 = vmatpush1.bf16.msra.mxu0 %v418
        %438 = vmatprep.subr.bf16.mxu0 0
        %439 = vmatpush1.bf16.msra.mxu0 %v419
        %440 = vmatprep.subr.bf16.mxu0 0
        %441 = vmatpush1.bf16.msra.mxu0 %v420
        %442 = vmatprep.subr.bf16.mxu0 0
        %443 = vmatpush1.bf16.msra.mxu0 %v421
        %444 = vmatprep.subr.bf16.mxu0 0
        %445 = vmatpush1.bf16.msra.mxu0 %v422
        %446 = vmatprep.subr.bf16.mxu0 0
        %447 = vmatpush1.bf16.msra.mxu0 %v423
        %448 = vmatprep.subr.bf16.mxu0 0
        %449 = vmatpush1.bf16.msra.mxu0 0
        %450 = vmatprep.subr.bf16.mxu0 0
        %451 = vmatpush1.bf16.msra.mxu0 0
        %452 = vmatprep.subr.bf16.mxu0 0
        %453 = vmatpush1.bf16.msra.mxu0 0
        %454 = vmatprep.subr.bf16.mxu0 0
        %455 = vmatpush1.bf16.msra.mxu0 0
        %456 = vmatprep.subr.bf16.mxu0 0
        %457 = vmatpush1.bf16.msra.mxu0 0
        %458 = vmatprep.subr.bf16.mxu0 0
        %459 = vmatpush1.bf16.msra.mxu0 0
        %460 = vmatprep.subr.bf16.mxu0 0
        %461 = vmatpush1.bf16.msra.mxu0 0
        %462 = vmatprep.subr.bf16.mxu0 0
        %463 = vmatpush1.bf16.msra.mxu0 0
        %464 = vmatprep.mubr.bf16.mxu0 0
        %465 = vmatmul.mubr.bf16.gmra.mrb[0].mxu0 %v360
        %v466 = vpop.f32.mrb[0].mxu0
        %v467 = vadd.f32 %v382, %v466
        %v468 = vpop.f32.mrb[0].mxu0
        %v469 = vpop.f32.mrb[0].mxu0
        %v470 = vpop.f32.mrb[0].mxu0
        %471 = vdwg.mxu0
        %v472 = vmax.f32 %v467, 0.0
        %v473 = vpack.c.bf16 %v472, %v472
        %v474 = vld [vmem:[%s5] sm:$0xf]
        %v475 = vld [vmem:[%s5 + $0x4] sm:$0xf]
        %v476 = vld [vmem:[%s5 + $0x8] sm:$0xf]
        %v477 = vld [vmem:[%s5 + $0xc] sm:$0xf]
        %v478 = vld [vmem:[%s5 + $0x10] sm:$0xf]
        %v479 = vld [vmem:[%s5 + $0x14] sm:$0xf]
        %v480 = vld [vmem:[%s5 + $0x18] sm:$0xf]
        %v481 = vld [vmem:[%s5 + $0x1c] sm:$0xf]
        %v482 = vld [vmem:[%s5 + $0x20] sm:$0xf]
        %v483 = vld [vmem:[%s5 + $0x24] sm:$0xf]
        %v484 = vld [vmem:[%s5 + $0x28] sm:$0xf]
        %v485 = vld [vmem:[%s5 + $0x2c] sm:$0xf]
        %v486 = vld [vmem:[%s5 + $0x30] sm:$0xf]
        %v487 = vld [vmem:[%s5 + $0x34] sm:$0xf]
        %v488 = vld [vmem:[%s5 + $0x38] sm:$0xf]
        %v489 = vld [vmem:[%s5 + $0x3c] sm:$0xf]
        %v490 = vld [vmem:[%s6] sm:$0x1]
        %v492 = vlaneseq
        %v493 = vshrl.u32 %v492, 7
        %v494 = vsub.s32 0, %v493
        %v495 = vrot.slane %v490, %v494
        %v513 = vunpack.c.l.b16 %v474
        %v514 = vunpack.c.l.b16 %v475
        %v515 = vunpack.c.l.b16 %v476
        %v516 = vunpack.c.l.b16 %v477
        %v517 = vunpack.c.l.b16 %v478
        %v518 = vunpack.c.l.b16 %v479
        %v519 = vunpack.c.l.b16 %v480
        %v520 = vunpack.c.l.b16 %v481
        %v521 = vunpack.c.l.b16 %v482
        %v522 = vunpack.c.l.b16 %v483
        %v523 = vunpack.c.l.b16 %v484
        %v524 = vunpack.c.l.b16 %v485
        %v525 = vunpack.c.l.b16 %v486
        %v526 = vunpack.c.l.b16 %v487
        %v527 = vunpack.c.l.b16 %v488
        %v528 = vunpack.c.l.b16 %v489
        %v529 = vpack.c.b16 %v514, %v513
        %v530 = vpack.c.b16 %v516, %v515
        %v531 = vpack.c.b16 %v518, %v517
        %v532 = vpack.c.b16 %v520, %v519
        %v533 = vpack.c.b16 %v522, %v521
        %v534 = vpack.c.b16 %v524, %v523
        %v535 = vpack.c.b16 %v526, %v525
        %v536 = vpack.c.b16 %v528, %v527
        %545 = vmatprep.subr.bf16.mxu0 0
        %546 = vmatpush1.bf16.msra.mxu0 %v529
        %547 = vmatprep.subr.bf16.mxu0 0
        %548 = vmatpush1.bf16.msra.mxu0 %v530
        %549 = vmatprep.subr.bf16.mxu0 0
        %550 = vmatpush1.bf16.msra.mxu0 %v531
        %551 = vmatprep.subr.bf16.mxu0 0
        %552 = vmatpush1.bf16.msra.mxu0 %v532
        %553 = vmatprep.subr.bf16.mxu0 0
        %554 = vmatpush1.bf16.msra.mxu0 %v533
        %555 = vmatprep.subr.bf16.mxu0 0
        %556 = vmatpush1.bf16.msra.mxu0 %v534
        %557 = vmatprep.subr.bf16.mxu0 0
        %558 = vmatpush1.bf16.msra.mxu0 %v535
        %559 = vmatprep.subr.bf16.mxu0 0
        %560 = vmatpush1.bf16.msra.mxu0 %v536
        %561 = vmatprep.subr.bf16.mxu0 0
        %562 = vmatpush1.bf16.msra.mxu0 0
        %563 = vmatprep.subr.bf16.mxu0 0
        %564 = vmatpush1.bf16.msra.mxu0 0
        %565 = vmatprep.subr.bf16.mxu0 0
        %566 = vmatpush1.bf16.msra.mxu0 0
        %567 = vmatprep.subr.bf16.mxu0 0
        %568 = vmatpush1.bf16.msra.mxu0 0
        %569 = vmatprep.subr.bf16.mxu0 0
        %570 = vmatpush1.bf16.msra.mxu0 0
        %571 = vmatprep.subr.bf16.mxu0 0
        %572 = vmatpush1.bf16.msra.mxu0 0
        %573 = vmatprep.subr.bf16.mxu0 0
        %574 = vmatpush1.bf16.msra.mxu0 0
        %575 = vmatprep.subr.bf16.mxu0 0
        %576 = vmatpush1.bf16.msra.mxu0 0
        %577 = vmatprep.mubr.bf16.mxu0 0
        %578 = vmatmul.mubr.bf16.gmra.mrb[0].mxu0 %v473
        %v579 = vpop.f32.mrb[0].mxu0
        %v580 = vadd.f32 %v495, %v579
        %v581 = vpop.f32.mrb[0].mxu0
        %v582 = vpop.f32.mrb[0].mxu0
        %v583 = vpop.f32.mrb[0].mxu0
        %584 = vdwg.mxu0
        %vm585 = vcmask 130048
        %586 = vst.msk [vmem:[%s284] sm:$0xff] %vm585, %v580
        %s587 = sand.u32 %s182, 1
        %s588 = scalar_lea.sflag [#allocation4], %s587
        %s589 = sand.u32 %s182, 1
        %s590 = smul.addr %s589, 8
        %s591 = scalar_lea.vmem [#allocation5], %s590
        // Predicated region
        $region53: #{tpu_custom_call.1} parent=47 // pred_check
          %p592 = pneg %p192
        $region54: #{tpu_custom_call.1} parent=47 // pred_check_branch
          %594 = sbr.rel (%p592) target = $region56
        $region55: #{tpu_custom_call.1} parent=47 // pred_region
          %s596 = ssub.s32 128, 128
          %597 = vsyncadd %s588, %s596
          %s598 = smul.addr %s22, 128
          %s599 = scalar_lea.hbm %s7, %s598
          %s601 = sshll.u32 %s591, 4
          %s602 = int_to_ptr.vmem [resolvable:$true] %s601
          %604 = dma.vmem_to_hbm [thread:$0]  %s602, 128, %s599, %s588
        $region56: #{tpu_custom_call.1} parent=47 // pred_fallthru
          _
      $region48: #{tpu_custom_call.1} parent=5 // pred_fallthru
        _
      %p605 = scmp.le.s32.totalorder 2, %s17
      // Predicated region
      $region57: #{tpu_custom_call.1} parent=5 // pred_check
        %p606 = pneg %p605
      $region58: #{tpu_custom_call.1} parent=5 // pred_check_branch
        %608 = sbr.rel (%p606) target = $region60
      $region59: #{tpu_custom_call.1} parent=5 // pred_region
        %s609 = ssub.s32 %s17, 2
        // Predicated region
        $region61: #{tpu_custom_call.1} parent=59 // pred_check
          %p610 = pneg %p198
        $region62: #{tpu_custom_call.1} parent=59 // pred_check_branch
          %612 = sbr.rel (%p610) target = $region64
        $region63: #{tpu_custom_call.1} parent=59 // pred_region
          %s613 = sand.u32 %s183, 1
          %s614 = scalar_lea.sflag [#allocation4], %s613
          %s615 = sand.u32 %s183, 1
          %s616 = smul.addr %s615, 8
          %s617 = scalar_lea.vmem [#allocation5], %s616
          %618 = dma.done %s614, 128
        $region64: #{tpu_custom_call.1} parent=59 // pred_fallthru
          _
      $region60: #{tpu_custom_call.1} parent=5 // pred_fallthru
        _
    $region6: #{tpu_custom_call.1} parent=1 // loop_footer
      %s21 = sadd.s32 1, %s17
    $region7: #{tpu_custom_call.1} parent=1 // loop_footer_branch
      %16 = sbr.rel target = $region3
    $region8: #{tpu_custom_call.1} parent=1 // loop_exit
      _
    %619 = vsyncpa [#allocation3], 1
    %s620 = scalar_lea.sflag [#allocation3], 1
    %621 = vsyncpa %s620, 1
    %622 = vsyncpa [#allocation4], 1
    %s623 = scalar_lea.sflag [#allocation4], 1
    %624 = vsyncpa %s623, 1

</llo_original>
